<compile_context>
chip_gen: v5e
topology: v5e:2x2
jax: 0.10.0
libtpu: 0.0.40
codegen_flags: <defaults>
</compile_context>

<pallas_src>
import functools

import numpy as np
import jax
import jax.numpy as jnp
from jax.experimental import pallas as pl
from jax.experimental.pallas import tpu as pltpu

LANES = 1024            # lane-dense slab width (multiple of 128)
MAX_BLOCK_ROWS = 1024   # 1024 * 1024 * 4 B = 4 MiB per f32 block buffer
TARGET_BLOCKS = 8       # aim for >= 8 grid steps (megacore + DMA/compute overlap)


def _apply_composition(x, fa_consts, thresh, remove):
    """Shared hinge-form evaluation (used by the kernel body and the jnp tail).

    fa_consts: tuple of (c, s0, x_lo, x_hi, hinges) per approximator, where
               hinges is a tuple of (delta_slope, knot_x) pairs.  All Python
               floats -> baked into the program, no SMEM traffic.
    thresh:    Python float, min knot of the LAST approximator (Remove mask).
    """
    y = x.astype(jnp.float32)
    if remove:
        # Mask is computed on the ORIGINAL input (before composition), matching
        # `mask = x <= self.function_approximators[-1].inputs.min()`.
        mask = y <= thresh
    for (c, s0, x_lo, x_hi, hinges) in fa_consts:
        z = jnp.clip(y, x_lo, x_hi)
        acc = c + s0 * z
        for (dk, xk) in hinges:
            acc = acc + dk * jnp.maximum(z, xk)
        y = acc  # already float32 (PyTorch's `.float()` after every approximator)
    if remove:
        y = jnp.where(mask, jnp.float32(0.0), y)
    return y


def _composition_kernel(x_ref, o_ref, *, fa_consts, thresh, remove):
    o_ref[...] = _apply_composition(x_ref[...], fa_consts, thresh, remove)


def _precompute_constants(knots_x, knots_y):
    """Fold knots into hinge-form constants (done once, on host, in float64)."""
    kx = np.asarray(knots_x, dtype=np.float64)
    ky = np.asarray(knots_y, dtype=np.float64)
    L, K = kx.shape
    consts = []
    for l in range(L):
        dx = kx[l, 1:] - kx[l, :-1]
        # NOTE: duplicate knot inputs (flat segments) are not supported by the
        # folded hinge form; they would divide by zero in the reference too.
        assert np.all(dx > 0), "knot inputs must be strictly increasing"
        s = (ky[l, 1:] - ky[l, :-1]) / dx            # (K-1,) segment slopes
        s0 = s[0]
        d = s[1:] - s[:-1]                           # (K-2,) slope deltas at interior knots
        c = ky[l, 0] - s0 * kx[l, 0] - float(np.sum(d * kx[l, 1:-1]))
        hinges = tuple((float(d[k]), float(kx[l, k + 1])) for k in range(K - 2))
        consts.append((float(c), float(s0), float(kx[l, 0]), float(kx[l, -1]), hinges))
    thresh = float(np.min(kx[-1]))
    return tuple(consts), thresh


def _pick_block_rows(rows):
    """Block rows: multiple of 8, <= MAX_BLOCK_ROWS, targeting >= TARGET_BLOCKS
    grid steps so both v7x TensorCores get work and DMA overlaps compute."""
    if rows <= 8:
        return rows                       # single full-array block (full-dim rule)
    target = -(-rows // TARGET_BLOCKS)    # cdiv
    block_rows = -(-target // 8) * 8      # round up to a multiple of 8
    return max(8, min(block_rows, MAX_BLOCK_ROWS))


def function_composition_forward(x, knots_x, knots_y, *, remove=False):
    """Pallas forward pass of Function_composition.

    x:       (B, C, H, W) array (NCHW, as in the PyTorch module)
    knots_x: (L, K) strictly increasing along K  -- `inputs` of each approximator
    knots_y: (L, K)                              -- `outputs` of each approximator
    Knot tables are treated as deployment constants (baked into the kernel).
    """
    orig_shape = x.shape
    n = x.size

    fa_consts, thresh = _precompute_constants(knots_x, knots_y)

    # Keep float/int inputs in their native dtype (fewer DMA bytes); the kernel
    # casts to f32 on the VPU.  Only exotic dtypes are upcast in the wrapper.
    if not (jnp.issubdtype(x.dtype, jnp.floating)
            or jnp.issubdtype(x.dtype, jnp.integer)):
        x = x.astype(jnp.float32)
    xf = x.reshape(-1)                    # metadata-only for contiguous inputs

    rows = n // LANES                     # LANES-aligned prefix handled by the kernel
    n_main = rows * LANES

    parts = []
    if rows > 0:
        block_rows = _pick_block_rows(rows)
        grid = (pl.cdiv(rows, block_rows),)     # partial last block: Pallas masks it
        x2d = xf[:n_main].reshape(rows, LANES)  # full slice (no-op) when aligned

        ops_per_elem = sum(4 + 3 * len(h) for (_, _, _, _, h) in fa_consts)
        if remove:
            ops_per_elem += 2
        cost = pl.CostEstimate(
            flops=ops_per_elem * n_main,
            transcendentals=0,
            bytes_accessed=n_main * (x2d.dtype.itemsize + 4))

        kernel = functools.partial(
            _composition_kernel, fa_consts=fa_consts, thresh=thresh, remove=remove)

        main_out = pl.pallas_call(
            kernel,
            out_shape=jax.ShapeDtypeStruct((rows, LANES), jnp.float32),
            grid_spec=pl.GridSpec(
                grid=grid,
                in_specs=[pl.BlockSpec((block_rows, LANES), lambda i: (i, 0))],
                out_specs=pl.BlockSpec((block_rows, LANES), lambda i: (i, 0)),
            ),
            compiler_params=pltpu.CompilerParams(
                dimension_semantics=("parallel",),     # shards grid across TCs (v7x)
                vmem_limit_bytes=32 * 1024 * 1024),    # 1024-row blocks safe on v5e
            cost_estimate=cost,
        )(x2d)
        parts.append(main_out.reshape(-1))

    if n_main != n:
        # Ragged tail (< 1024 elements): same hinge math, trivial jnp expression.
        parts.append(_apply_composition(xf[n_main:], fa_consts, thresh, remove))

    out = parts[0] if len(parts) == 1 else jnp.concatenate(parts)
    # Output dtype is float32 (PyTorch forward casts with `.float()`).
    return out.reshape(orig_shape)


def _reference_forward(x, knots_x, knots_y, *, remove=False):
    """Pure-JAX reference with the module's exact semantics (clip-sum form)."""
    x = x.astype(jnp.float32)
    mask = x <= jnp.min(knots_x[-1]) if remove else jnp.zeros_like(x, dtype=bool)
    y = x
    L, K = knots_x.shape
    for l in range(L):
        acc = jnp.full_like(y, knots_y[l, 0])
        for k in range(K - 1):
            s = (knots_y[l, k + 1] - knots_y[l, k]) / (knots_x[l, k + 1] - knots_x[l, k])
            acc = acc + s * (jnp.clip(y, knots_x[l, k], knots_x[l, k + 1]) - knots_x[l, k])
        y = acc.astype(jnp.float32)
    return jnp.where(mask, 0.0, y)


if __name__ == "__main__":
    key = jax.random.PRNGKey(0)
    B, C, H, W = 2, 4, 16, 16
    x = jax.random.normal(key, (B, C, H, W), dtype=jnp.float32)

    # Two composed piecewise-linear approximators, K=8 knots each,
    # deterministically constructed (no checkpoint load).
    L, K = 2, 8
    kx0 = jnp.linspace(-3.0, 3.0, K)             # approximator 0 knot inputs
    ky0 = jnp.tanh(kx0) * 2.0                    # approximator 0 knot outputs
    kx1 = jnp.linspace(-2.0, 2.0, K)             # approximator 1 knot inputs
    ky1 = kx1 ** 2 * 0.5 - 0.25                  # approximator 1 knot outputs
    knots_x = jnp.stack([kx0, kx1]).astype(jnp.float32)
    knots_y = jnp.stack([ky0, ky1]).astype(jnp.float32)

    # Remove=True path (mask uses the LAST approximator's inputs.min()).
    out = jax.block_until_ready(
        function_composition_forward(x, knots_x, knots_y, remove=True))
    ref = _reference_forward(x, knots_x, knots_y, remove=True)
    assert out.shape == x.shape and out.dtype == jnp.float32
    assert jnp.allclose(out, ref, atol=2e-5, rtol=2e-5)

    # Remove=False path.
    out2 = jax.block_until_ready(
        function_composition_forward(x, knots_x, knots_y, remove=False))
    ref2 = _reference_forward(x, knots_x, knots_y, remove=False)
    assert jnp.allclose(out2, ref2, atol=2e-5, rtol=2e-5)

    # Odd, non-tile-aligned shape exercises the ragged-tail (no pad/slice) path.
    x3 = jax.random.normal(jax.random.PRNGKey(1), (3, 5, 7, 11), dtype=jnp.float32)
    out3 = jax.block_until_ready(
        function_composition_forward(x3, knots_x, knots_y, remove=True))
    ref3 = _reference_forward(x3, knots_x, knots_y, remove=True)
    assert out3.shape == x3.shape
    assert jnp.allclose(out3, ref3, atol=2e-5, rtol=2e-5)

    # Larger shape exercises the multi-block grid (parallel semantics, block_rows=8).
    x4 = jax.random.normal(jax.random.PRNGKey(2), (2, 4, 64, 64), dtype=jnp.bfloat16)
    out4 = jax.block_until_ready(
        function_composition_forward(x4, knots_x, knots_y, remove=True))
    ref4 = _reference_forward(x4.astype(jnp.float32), knots_x, knots_y, remove=True)
    assert out4.dtype == jnp.float32
    assert jnp.allclose(out4, ref4, atol=3e-2, rtol=3e-2)   # bf16 input quantization

    print("KERNEL_OK")
</pallas_src>

<mosaic_0001>
module attributes {stable_mosaic.version = 11 : i64} {
  func.func @_composition_kernel(%arg0: i32, %arg1: memref<2x1024xf32, #tpu.memory_space<vmem>>, %arg2: memref<2x1024xf32, #tpu.memory_space<vmem>>) attributes {dimension_semantics = [#tpu.dimension_semantics<parallel>], iteration_bounds = array<i64: 1>, scalar_prefetch = 0 : i64, scratch_operands = 0 : i64, tpu.core_type = #tpu.core_type<tc>, window_params = [{transform_indices = @transform_0, window_bounds = array<i64: 2, 1024>}, {transform_indices = @transform_1, window_bounds = array<i64: 2, 1024>}]} {
    %c0 = arith.constant 0 : index
    %c0_0 = arith.constant 0 : index
    %0 = vector.load %arg1[%c0, %c0_0] : memref<2x1024xf32, #tpu.memory_space<vmem>>, vector<2x1024xf32>
    %cst = arith.constant -2.000000e+00 : f32
    %1 = vector.broadcast %cst : f32 to vector<2x1024xf32>
    %2 = arith.cmpf ole, %0, %1 : vector<2x1024xf32>
    %cst_1 = arith.constant -3.000000e+00 : f32
    %cst_2 = arith.constant 3.000000e+00 : f32
    %3 = vector.broadcast %cst_1 : f32 to vector<2x1024xf32>
    %4 = arith.maximumf %3, %0 : vector<2x1024xf32>
    %5 = vector.broadcast %cst_2 : f32 to vector<2x1024xf32>
    %6 = arith.minimumf %5, %4 : vector<2x1024xf32>
    %cst_3 = arith.constant 0.0518201366 : f32
    %7 = vector.broadcast %cst_3 : f32 to vector<2x1024xf32>
    %8 = arith.mulf %7, %6 : vector<2x1024xf32>
    %cst_4 = arith.constant 1.8346498 : f32
    %9 = vector.broadcast %cst_4 : f32 to vector<2x1024xf32>
    %10 = arith.addf %9, %8 : vector<2x1024xf32>
    %cst_5 = arith.constant -2.14285707 : f32
    %11 = vector.broadcast %cst_5 : f32 to vector<2x1024xf32>
    %12 = arith.maximumf %6, %11 : vector<2x1024xf32>
    %cst_6 = arith.constant 0.216154382 : f32
    %13 = vector.broadcast %cst_6 : f32 to vector<2x1024xf32>
    %14 = arith.mulf %13, %12 : vector<2x1024xf32>
    %15 = arith.addf %10, %14 : vector<2x1024xf32>
    %cst_7 = arith.constant -1.28571415 : f32
    %16 = vector.broadcast %cst_7 : f32 to vector<2x1024xf32>
    %17 = arith.maximumf %6, %16 : vector<2x1024xf32>
    %cst_8 = arith.constant 0.791063129 : f32
    %18 = vector.broadcast %cst_8 : f32 to vector<2x1024xf32>
    %19 = arith.mulf %18, %17 : vector<2x1024xf32>
    %20 = arith.addf %15, %19 : vector<2x1024xf32>
    %cst_9 = arith.constant -0.428571224 : f32
    %21 = vector.broadcast %cst_9 : f32 to vector<2x1024xf32>
    %22 = arith.maximumf %6, %21 : vector<2x1024xf32>
    %cst_10 = arith.constant 0.826887131 : f32
    %23 = vector.broadcast %cst_10 : f32 to vector<2x1024xf32>
    %24 = arith.mulf %23, %22 : vector<2x1024xf32>
    %25 = arith.addf %20, %24 : vector<2x1024xf32>
    %cst_11 = arith.constant 0.428571701 : f32
    %26 = vector.broadcast %cst_11 : f32 to vector<2x1024xf32>
    %27 = arith.maximumf %6, %26 : vector<2x1024xf32>
    %cst_12 = arith.constant -0.826887547 : f32
    %28 = vector.broadcast %cst_12 : f32 to vector<2x1024xf32>
    %29 = arith.mulf %28, %27 : vector<2x1024xf32>
    %30 = arith.addf %25, %29 : vector<2x1024xf32>
    %cst_13 = arith.constant 1.28571451 : f32
    %31 = vector.broadcast %cst_13 : f32 to vector<2x1024xf32>
    %32 = arith.maximumf %6, %31 : vector<2x1024xf32>
    %cst_14 = arith.constant -0.791062891 : f32
    %33 = vector.broadcast %cst_14 : f32 to vector<2x1024xf32>
    %34 = arith.mulf %33, %32 : vector<2x1024xf32>
    %35 = arith.addf %30, %34 : vector<2x1024xf32>
    %cst_15 = arith.constant 2.14285755 : f32
    %36 = vector.broadcast %cst_15 : f32 to vector<2x1024xf32>
    %37 = arith.maximumf %6, %36 : vector<2x1024xf32>
    %cst_16 = arith.constant -0.216154456 : f32
    %38 = vector.broadcast %cst_16 : f32 to vector<2x1024xf32>
    %39 = arith.mulf %38, %37 : vector<2x1024xf32>
    %40 = arith.addf %35, %39 : vector<2x1024xf32>
    %cst_17 = arith.constant -2.000000e+00 : f32
    %cst_18 = arith.constant 2.000000e+00 : f32
    %41 = vector.broadcast %cst_17 : f32 to vector<2x1024xf32>
    %42 = arith.maximumf %41, %40 : vector<2x1024xf32>
    %43 = vector.broadcast %cst_18 : f32 to vector<2x1024xf32>
    %44 = arith.minimumf %43, %42 : vector<2x1024xf32>
    %cst_19 = arith.constant -1.71428585 : f32
    %45 = vector.broadcast %cst_19 : f32 to vector<2x1024xf32>
    %46 = arith.mulf %45, %44 : vector<2x1024xf32>
    %cst_20 = arith.constant -1.67857182 : f32
    %47 = vector.broadcast %cst_20 : f32 to vector<2x1024xf32>
    %48 = arith.addf %47, %46 : vector<2x1024xf32>
    %cst_21 = arith.constant -1.42857146 : f32
    %49 = vector.broadcast %cst_21 : f32 to vector<2x1024xf32>
    %50 = arith.maximumf %44, %49 : vector<2x1024xf32>
    %cst_22 = arith.constant 0.571428776 : f32
    %51 = vector.broadcast %cst_22 : f32 to vector<2x1024xf32>
    %52 = arith.mulf %51, %50 : vector<2x1024xf32>
    %53 = arith.addf %48, %52 : vector<2x1024xf32>
    %cst_23 = arith.constant -0.857142865 : f32
    %54 = vector.broadcast %cst_23 : f32 to vector<2x1024xf32>
    %55 = arith.maximumf %44, %54 : vector<2x1024xf32>
    %cst_24 = arith.constant 0.571428537 : f32
    %56 = vector.broadcast %cst_24 : f32 to vector<2x1024xf32>
    %57 = arith.mulf %56, %55 : vector<2x1024xf32>
    %58 = arith.addf %53, %57 : vector<2x1024xf32>
    %cst_25 = arith.constant -0.285714179 : f32
    %59 = vector.broadcast %cst_25 : f32 to vector<2x1024xf32>
    %60 = arith.maximumf %44, %59 : vector<2x1024xf32>
    %cst_26 = arith.constant 0.571428657 : f32
    %61 = vector.broadcast %cst_26 : f32 to vector<2x1024xf32>
    %62 = arith.mulf %61, %60 : vector<2x1024xf32>
    %63 = arith.addf %58, %62 : vector<2x1024xf32>
    %cst_27 = arith.constant 0.285714388 : f32
    %64 = vector.broadcast %cst_27 : f32 to vector<2x1024xf32>
    %65 = arith.maximumf %44, %64 : vector<2x1024xf32>
    %cst_28 = arith.constant 0.571428597 : f32
    %66 = vector.broadcast %cst_28 : f32 to vector<2x1024xf32>
    %67 = arith.mulf %66, %65 : vector<2x1024xf32>
    %68 = arith.addf %63, %67 : vector<2x1024xf32>
    %cst_29 = arith.constant 0.857142925 : f32
    %69 = vector.broadcast %cst_29 : f32 to vector<2x1024xf32>
    %70 = arith.maximumf %44, %69 : vector<2x1024xf32>
    %cst_30 = arith.constant 0.571428537 : f32
    %71 = vector.broadcast %cst_30 : f32 to vector<2x1024xf32>
    %72 = arith.mulf %71, %70 : vector<2x1024xf32>
    %73 = arith.addf %68, %72 : vector<2x1024xf32>
    %cst_31 = arith.constant 1.4285717 : f32
    %74 = vector.broadcast %cst_31 : f32 to vector<2x1024xf32>
    %75 = arith.maximumf %44, %74 : vector<2x1024xf32>
    %cst_32 = arith.constant 0.571428716 : f32
    %76 = vector.broadcast %cst_32 : f32 to vector<2x1024xf32>
    %77 = arith.mulf %76, %75 : vector<2x1024xf32>
    %78 = arith.addf %73, %77 : vector<2x1024xf32>
    %cst_33 = arith.constant 0.000000e+00 : f32
    %79 = vector.broadcast %cst_33 : f32 to vector<2x1024xf32>
    %80 = arith.select %2, %79, %78 : vector<2x1024xi1>, vector<2x1024xf32>
    %c0_34 = arith.constant 0 : index
    %c0_35 = arith.constant 0 : index
    %81 = vector.load %arg2[%c0_34, %c0_35] : memref<2x1024xf32, #tpu.memory_space<vmem>>, vector<2x1024xf32>
    tpu.vector_store %arg2[%c0_34, %c0_35], %80 {strides = array<i32>} : memref<2x1024xf32, #tpu.memory_space<vmem>>, vector<2x1024xf32>,
    return
  }
  func.func @transform_0(%arg0: i32) -> (i32, i32) {
    %c0_i32 = arith.constant 0 : i32
    %c0_i32_0 = arith.constant 0 : i32
    return %arg0, %c0_i32 : i32, i32
  }
  func.func @transform_1(%arg0: i32) -> (i32, i32) {
    %c0_i32 = arith.constant 0 : i32
    %c0_i32_0 = arith.constant 0 : i32
    return %arg0, %c0_i32 : i32, i32
  }
}

</mosaic_0001>

<llo_original>
// kernel: tpu_custom_call.1
$region0: #{tpu_custom_call.1}
  #allocation0 [shape = 'u32[]', space=smem, size = 0x4, offset = 0x4, fixed_abs, tag = 'smem constant byte address 0x4 - core index']
  #allocation1 [shape = 'u32[72,128]{1,0:T(1,128)}', space=vmem, size = 0x9000, scoped, tag = 'internal scratch']
  %s0 = inlined_call_operand.hbm [shape: f32[2,1024], index: 0, kind: input, shape index: {}]
  %s1 = inlined_call_operand.hbm [shape: f32[2,1024], index: 1, kind: output, shape index: {}]
  %s2 = sld [smem:[#allocation0]]
  $region18: #{tpu_custom_call.1} parent=0
    _
  %s4 = ssub.s32 1, %s2
  %s5 = scalar_select 0, %s4, %s2
  $region1: #{tpu_custom_call.1} parent=0
    #allocation2 [shape = 'u8[8192]{0}', space=vmem, size = 0x2000, scoped, tag = 'input window, operand 0, single buffered']
    #allocation3 [shape = 's32[1]{0}', space=sflag, size = 0x4, scoped, tag = 'scoped memory for tpu_custom_call.1']
    #allocation4 [shape = 's32[1]{0}', space=sflag, size = 0x4, scoped, tag = 'scoped memory for tpu_custom_call.1']
    #allocation5 [shape = 'u8[8192]{0}', space=vmem, size = 0x2000, scoped, tag = 'output window, operand 0, single buffered']
    %6 = vsyncpa [#allocation3], 0
    %7 = vsyncpa [#allocation4], 0
    // Predicated region
    $region2: #{tpu_custom_call.1} parent=1 // pred_check
      _
    $region3: #{tpu_custom_call.1} parent=1 // pred_check_branch
      %9 = sbr.rel (0) target = $region5
    $region4: #{tpu_custom_call.1} parent=1 // pred_region
      %11 = vsyncadd [#allocation3], 0
      %s13 = sshll.u32 %s0, 4
      %s14 = int_to_ptr.hbm [resolvable:$true] %s13
      %s15 = sshll.u32 [#allocation2], 4
      %s16 = int_to_ptr.vmem [resolvable:$true] %s15
      %18 = dma.hbm_to_vmem [thread:$0]  %s14, 256, %s16, [#allocation3]
    $region5: #{tpu_custom_call.1} parent=1 // pred_fallthru
      _
    // Predicated region
    $region6: #{tpu_custom_call.1} parent=1 // pred_check
      _
    $region7: #{tpu_custom_call.1} parent=1 // pred_check_branch
      %20 = sbr.rel (0) target = $region9
    $region8: #{tpu_custom_call.1} parent=1 // pred_region
      %22 = dma.done [#allocation3], 256
    $region9: #{tpu_custom_call.1} parent=1 // pred_fallthru
      _
    %v23 = vld [vmem:[#allocation2] sm:$0xff]
    %v24 = vld [vmem:[#allocation2 + $0x8] sm:$0xff]
    %vm25 = vcmp.le.f32.partialorder %v23, -2.0
    %vm26 = vcmp.le.f32.partialorder %v24, -2.0
    %v27 = vmax.f32 %v23, -3.0
    %v28 = vmax.f32 %v24, -3.0
    %v29 = vmin.f32 %v27, 3.0
    %v30 = vmin.f32 %v28, 3.0
    %v31 = vmul.f32 %v29, 0.051820137
    %v32 = vmul.f32 %v30, 0.051820137
    %v33 = vadd.f32 %v31, 1.8346498
    %v34 = vadd.f32 %v32, 1.8346498
    %v35 = vmax.f32 %v29, -2.142857
    %v36 = vmax.f32 %v30, -2.142857
    %v37 = vmul.f32 %v35, 0.21615438
    %v38 = vmul.f32 %v36, 0.21615438
    %v39 = vadd.f32 %v33, %v37
    %v40 = vadd.f32 %v34, %v38
    %v41 = vmax.f32 %v29, -1.2857141
    %v42 = vmax.f32 %v30, -1.2857141
    %v43 = vmul.f32 %v41, 0.79106313
    %v44 = vmul.f32 %v42, 0.79106313
    %v45 = vadd.f32 %v39, %v43
    %v46 = vadd.f32 %v40, %v44
    %v47 = vmax.f32 %v29, -0.42857122
    %v48 = vmax.f32 %v30, -0.42857122
    %v49 = vmul.f32 %v47, 0.82688713
    %v50 = vmul.f32 %v48, 0.82688713
    %v51 = vadd.f32 %v45, %v49
    %v52 = vadd.f32 %v46, %v50
    %v53 = vmax.f32 %v29, 0.4285717
    %v54 = vmax.f32 %v30, 0.4285717
    %v55 = vmul.f32 %v53, -0.82688755
    %v56 = vmul.f32 %v54, -0.82688755
    %v57 = vadd.f32 %v51, %v55
    %v58 = vadd.f32 %v52, %v56
    %v59 = vmax.f32 %v29, 1.2857145
    %v60 = vmax.f32 %v30, 1.2857145
    %v61 = vmul.f32 %v59, -0.7910629
    %v62 = vmul.f32 %v60, -0.7910629
    %v63 = vadd.f32 %v57, %v61
    %v64 = vadd.f32 %v58, %v62
    %v65 = vmax.f32 %v29, 2.1428576
    %v66 = vmax.f32 %v30, 2.1428576
    %v67 = vmul.f32 %v65, -0.21615446
    %v68 = vmul.f32 %v66, -0.21615446
    %v69 = vadd.f32 %v63, %v67
    %v70 = vadd.f32 %v64, %v68
    %v71 = vmax.f32 %v69, -2.0
    %v72 = vmax.f32 %v70, -2.0
    %v73 = vmin.f32 %v71, 2.0
    %v74 = vmin.f32 %v72, 2.0
    %v75 = vmul.f32 %v73, -1.7142859
    %v76 = vmul.f32 %v74, -1.7142859
    %v77 = vadd.f32 %v75, -1.6785718
    %v78 = vadd.f32 %v76, -1.6785718
    %v79 = vmax.f32 %v73, -1.4285715
    %v80 = vmax.f32 %v74, -1.4285715
    %v81 = vmul.f32 %v79, 0.5714288
    %v82 = vmul.f32 %v80, 0.5714288
    %v83 = vadd.f32 %v77, %v81
    %v84 = vadd.f32 %v78, %v82
    %v85 = vmax.f32 %v73, -0.85714287
    %v86 = vmax.f32 %v74, -0.85714287
    %v87 = vmul.f32 %v85, 0.57142854
    %v88 = vmul.f32 %v86, 0.57142854
    %v89 = vadd.f32 %v83, %v87
    %v90 = vadd.f32 %v84, %v88
    %v91 = vmax.f32 %v73, -0.28571418
    %v92 = vmax.f32 %v74, -0.28571418
    %v93 = vmul.f32 %v91, 0.57142866
    %v94 = vmul.f32 %v92, 0.57142866
    %v95 = vadd.f32 %v89, %v93
    %v96 = vadd.f32 %v90, %v94
    %v97 = vmax.f32 %v73, 0.2857144
    %v98 = vmax.f32 %v74, 0.2857144
    %v99 = vmul.f32 %v97, 0.5714286
    %v100 = vmul.f32 %v98, 0.5714286
    %v101 = vadd.f32 %v95, %v99
    %v102 = vadd.f32 %v96, %v100
    %v103 = vmax.f32 %v73, 0.8571429
    %v104 = vmax.f32 %v74, 0.8571429
    %v105 = vmul.f32 %v103, 0.57142854
    %v106 = vmul.f32 %v104, 0.57142854
    %v107 = vadd.f32 %v101, %v105
    %v108 = vadd.f32 %v102, %v106
    %v109 = vmax.f32 %v73, 1.4285717
    %v110 = vmax.f32 %v74, 1.4285717
    %v111 = vmul.f32 %v109, 0.5714287
    %v112 = vmul.f32 %v110, 0.5714287
    %v113 = vadd.f32 %v107, %v111
    %v114 = vadd.f32 %v108, %v112
    %v115 = vsel %vm25, 0.0, %v113
    %v116 = vsel %vm26, 0.0, %v114
    %117 = vst [vmem:[#allocation5] sm:$0xff] %v115
    %118 = vst [vmem:[#allocation5 + $0x8] sm:$0xff] %v116
    // Predicated region
    $region10: #{tpu_custom_call.1} parent=1 // pred_check
      _
    $region11: #{tpu_custom_call.1} parent=1 // pred_check_branch
      %120 = sbr.rel (0) target = $region13
    $region12: #{tpu_custom_call.1} parent=1 // pred_region
      %122 = vsyncadd [#allocation4], 0
      %s124 = sshll.u32 [#allocation5], 4
      %s125 = int_to_ptr.vmem [resolvable:$true] %s124
      %s126 = sshll.u32 %s1, 4
      %s127 = int_to_ptr.hbm [resolvable:$true] %s126
      %129 = dma.vmem_to_hbm [thread:$0]  %s125, 256, %s127, [#allocation4]
    $region13: #{tpu_custom_call.1} parent=1 // pred_fallthru
      _
    // Predicated region
    $region14: #{tpu_custom_call.1} parent=1 // pred_check
      _
    $region15: #{tpu_custom_call.1} parent=1 // pred_check_branch
      %131 = sbr.rel (0) target = $region17
    $region16: #{tpu_custom_call.1} parent=1 // pred_region
      %133 = dma.done [#allocation4], 256
    $region17: #{tpu_custom_call.1} parent=1 // pred_fallthru
      _
    %134 = vsyncpa [#allocation3], 1
    %135 = vsyncpa [#allocation4], 1

</llo_original>
